<compile_context>
chip_gen: v7x
topology: tpu7x:2x2x1
jax: 0.10.0
libtpu: 0.0.40
codegen_flags: <defaults>
</compile_context>

<pallas_src>
import functools

import jax
import jax.numpy as jnp
from jax import lax
from jax.experimental import pallas as pl
from jax.experimental.pallas import tpu as pltpu


def _fire_kernel(W, x_ref, mask_ref, wsq_ref, bsq_ref, we1_ref, be1_ref,
                 we3_ref, be3_ref, o_ref, spad_ref, im_ref):
    # x_ref:    (Cin, HW)      f32  NCHW-flattened activation, one image
    # mask_ref: (9, HW)        bf16 per-tap validity masks (0/1)
    # wsq_ref:  (Csq, Cin)     bf16 | bsq_ref: (Csq, 1) f32
    # we1_ref:  (Ce1, Csq)     bf16 | be1_ref: (Ce1, 1) f32
    # we3_ref:  (Ce3, 9*Csq)   bf16, col index = (ky*3 + kx)*Csq + cin
    # be3_ref:  (Ce3, 1)       f32
    # o_ref:    (Ce1+Ce3, HW)  bf16 output (channels on sublanes -> NCHW)
    # spad_ref: VMEM (Csq, HW + 2*(W+1)) bf16 lane-padded squeeze activations
    # im_ref:   VMEM (9*Csq, HW)         bf16 im2col operand
    Csq, Cin = wsq_ref.shape
    HW = x_ref.shape[1]
    Ce1 = we1_ref.shape[0]
    padw = W + 1

    # --- squeeze 1x1 conv + ReLU (bf16 MXU operands, f32 accum/elementwise) --
    x = x_ref[...].astype(jnp.bfloat16)
    s = jnp.dot(wsq_ref[...], x, preferred_element_type=jnp.float32)
    s = jnp.maximum(s + bsq_ref[...], 0.0)            # (Csq, HW) f32
    s_bf = s.astype(jnp.bfloat16)

    # --- expand1x1 1x1 conv + ReLU ------------------------------------------
    e1 = jnp.dot(we1_ref[...], s_bf, preferred_element_type=jnp.float32)
    e1 = jnp.maximum(e1 + be1_ref[...], 0.0)           # (Ce1, HW) f32

    # --- expand3x3 conv (padding=1) as a single im2col matmul ----------------
    # Lane-padded copy of the squeeze activation: tap (ky,kx) is the static
    # lane slice starting at padw + (ky-1)*W + (kx-1).  Pad lanes must be
    # finite (they are multiplied by a 0 mask), so zero them every step
    # (megacore-safe: no reliance on program_id == 0).
    zpad = jnp.zeros((Csq, padw), jnp.bfloat16)
    spad_ref[:, :padw] = zpad
    spad_ref[:, padw + HW:] = zpad
    spad_ref[:, padw:padw + HW] = s_bf

    # Tap-by-tap writes into the preallocated (9*Csq, HW) bf16 scratch keep
    # the live set to a single tap; the MXU then gets one K = 9*Csq operand.
    for ky in range(3):
        for kx in range(3):
            t = ky * 3 + kx
            d = (ky - 1) * W + (kx - 1)
            if ky == 1 and kx == 1:                    # centre tap: mask == 1
                im_ref[t * Csq:(t + 1) * Csq, :] = s_bf
            else:
                tap = spad_ref[:, padw + d: padw + d + HW]
                im_ref[t * Csq:(t + 1) * Csq, :] = tap * mask_ref[t:t + 1, :]

    e3 = jnp.dot(we3_ref[...], im_ref[...], preferred_element_type=jnp.float32)
    e3 = jnp.maximum(e3 + be3_ref[...], 0.0)           # (Ce3, HW) f32

    # --- single full-width, lane-dense bf16 store of the channel concat ------
    o_ref[...] = jnp.concatenate([e1, e3], axis=0).astype(o_ref.dtype)


def fire_forward(x_nchw, params):
    """Fire block forward.  x_nchw: (N, Cin, H, W) float32, PyTorch layout."""
    wsq, bsq, we1, be1, we3, be3 = params
    N, Cin, H, W = x_nchw.shape
    Csq = wsq.shape[0]
    Ce1 = we1.shape[0]
    Ce3 = we3.shape[0]
    Cout = Ce1 + Ce3
    HW = H * W

    # NCHW -> (N, Cin, H*W): collapses contiguous trailing dims, no HBM copy.
    x2d = x_nchw.reshape(N, Cin, HW)

    # Per-tap validity masks over the flattened row-major pixel index p=y*W+x
    # (exact 0/1 in bf16); computed outside the kernel so no in-kernel div/mod.
    yy, xx = jnp.meshgrid(jnp.arange(H), jnp.arange(W), indexing="ij")
    yy = yy.reshape(-1)
    xx = xx.reshape(-1)
    masks = []
    for ky in range(3):
        for kx in range(3):
            dy, dx = ky - 1, kx - 1
            ok = ((yy + dy >= 0) & (yy + dy < H) &
                  (xx + dx >= 0) & (xx + dx < W))
            masks.append(ok)
    mask = jnp.stack(masks, axis=0).astype(jnp.bfloat16)        # (9, HW)

    grid_spec = pltpu.PrefetchScalarGridSpec(
        num_scalar_prefetch=0,
        grid=(N,),
        in_specs=[
            pl.BlockSpec((None, Cin, HW), lambda n: (n, 0, 0)),
            pl.BlockSpec((9, HW), lambda n: (0, 0)),
            pl.BlockSpec((Csq, Cin), lambda n: (0, 0)),
            pl.BlockSpec((Csq, 1), lambda n: (0, 0)),
            pl.BlockSpec((Ce1, Csq), lambda n: (0, 0)),
            pl.BlockSpec((Ce1, 1), lambda n: (0, 0)),
            pl.BlockSpec((Ce3, 9 * Csq), lambda n: (0, 0)),
            pl.BlockSpec((Ce3, 1), lambda n: (0, 0)),
        ],
        out_specs=pl.BlockSpec((None, Cout, HW), lambda n: (n, 0, 0)),
        scratch_shapes=[
            pltpu.VMEM((Csq, HW + 2 * (W + 1)), jnp.bfloat16),  # padded s
            pltpu.VMEM((9 * Csq, HW), jnp.bfloat16),            # im2col
        ],
    )

    # Explicit VMEM budget: double-buffered blocks + weights + scratch, with
    # generous headroom; capped at 32 MiB (safe on v5e/v6e/v7x).
    bf2, f4 = 2, 4
    est = (2 * Cin * HW * f4
           + 2 * 9 * HW * bf2
           + 2 * Cout * HW * bf2
           + 2 * (Csq * Cin + Ce1 * Csq + Ce3 * 9 * Csq) * bf2
           + 2 * (Csq + Ce1 + Ce3) * f4
           + (9 * Csq * HW + Csq * (HW + 2 * (W + 1))) * bf2)
    vmem_limit = int(min(4 * est + (8 << 20), 32 << 20))

    out2d = pl.pallas_call(
        functools.partial(_fire_kernel, W),
        out_shape=jax.ShapeDtypeStruct((N, Cout, HW), jnp.bfloat16),
        grid_spec=grid_spec,
        compiler_params=pltpu.CompilerParams(
            dimension_semantics=("parallel",),
            vmem_limit_bytes=vmem_limit),
    )(x2d, mask, wsq, bsq, we1, be1, we3, be3)

    # (N, Cout, H*W) -> (N, Cout, H, W): free split of the trailing dim.
    return out2d.reshape(N, Cout, H, W)


def init_fire_params(key, inplanes, squeeze_planes, expand1x1_planes,
                     expand3x3_planes):
    """Deterministic parameter init (PyTorch OIHW shapes) + kernel layouts."""
    k = jax.random.split(key, 6)
    w_sq_t = jax.random.normal(k[0], (squeeze_planes, inplanes, 1, 1),
                               jnp.float32) * 0.1
    b_sq = jax.random.normal(k[1], (squeeze_planes,), jnp.float32) * 0.1
    w_e1_t = jax.random.normal(k[2], (expand1x1_planes, squeeze_planes, 1, 1),
                               jnp.float32) * 0.1
    b_e1 = jax.random.normal(k[3], (expand1x1_planes,), jnp.float32) * 0.1
    w_e3_t = jax.random.normal(k[4], (expand3x3_planes, squeeze_planes, 3, 3),
                               jnp.float32) * 0.1
    b_e3 = jax.random.normal(k[5], (expand3x3_planes,), jnp.float32) * 0.1

    # Kernel layouts (channels-on-sublanes matmuls):
    #   1x1 conv -> (Cout, Cin)  (OIHW squeezed, no transpose)
    #   3x3 conv -> (Ce3, 9*Csq) with col = (ky*3 + kx)*Csq + cin
    wsq = w_sq_t[:, :, 0, 0].astype(jnp.bfloat16)
    we1 = w_e1_t[:, :, 0, 0].astype(jnp.bfloat16)
    we3 = jnp.transpose(w_e3_t, (0, 2, 3, 1)).reshape(
        expand3x3_planes, 9 * squeeze_planes).astype(jnp.bfloat16)
    params = (wsq, b_sq.reshape(-1, 1), we1, b_e1.reshape(-1, 1),
              we3, b_e3.reshape(-1, 1))
    torch_style = (w_sq_t, b_sq, w_e1_t, b_e1, w_e3_t, b_e3)
    return params, torch_style


def fire_reference(x_nchw, torch_params):
    """Plain-JAX f32 reference matching torch.nn.Conv2d semantics (NCHW/OIHW)."""
    w_sq, b_sq, w_e1, b_e1, w_e3, b_e3 = torch_params
    dn = ("NCHW", "OIHW", "NCHW")

    def conv(x, w, b, padding):
        y = lax.conv_general_dilated(x, w, window_strides=(1, 1),
                                     padding=padding, dimension_numbers=dn)
        return y + b.reshape(1, -1, 1, 1)

    s = jax.nn.relu(conv(x_nchw, w_sq, b_sq, "VALID"))
    e1 = jax.nn.relu(conv(s, w_e1, b_e1, "VALID"))
    e3 = jax.nn.relu(conv(s, w_e3, b_e3, ((1, 1), (1, 1))))
    return jnp.concatenate([e1, e3], axis=1)


if __name__ == "__main__":
    # Small shapes: batch=2, inplanes=4, H=W=16, squeeze=8, expand1x1=8, expand3x3=8
    N, Cin, H, W = 2, 4, 16, 16
    squeeze_planes, expand1x1_planes, expand3x3_planes = 8, 8, 8

    key = jax.random.PRNGKey(0)
    kx_, kp = jax.random.split(key)
    x = jax.random.normal(kx_, (N, Cin, H, W), jnp.float32)

    params, torch_params = init_fire_params(
        kp, Cin, squeeze_planes, expand1x1_planes, expand3x3_planes)

    out = fire_forward(x, params)
    out = jax.block_until_ready(out)

    ref = fire_reference(x, torch_params)
    assert out.shape == (N, expand1x1_planes + expand3x3_planes, H, W)
    assert out.dtype == jnp.bfloat16
    # bf16 MXU operands + bf16 output -> loosened tolerance vs f32 reference.
    err = float(jnp.max(jnp.abs(out.astype(jnp.float32) - ref)))
    assert jnp.allclose(out.astype(jnp.float32), ref, rtol=2e-2, atol=2e-2), err

    print("KERNEL_OK")
</pallas_src>

<mosaic_0001>
module attributes {stable_mosaic.version = 11 : i64} {
  func.func @_fire_kernel(%arg0: i32, %arg1: memref<1x4x256xf32, #tpu.memory_space<vmem>>, %arg2: memref<9x256xbf16, #tpu.memory_space<vmem>>, %arg3: memref<8x4xbf16, #tpu.memory_space<vmem>>, %arg4: memref<8x1xf32, #tpu.memory_space<vmem>>, %arg5: memref<8x8xbf16, #tpu.memory_space<vmem>>, %arg6: memref<8x1xf32, #tpu.memory_space<vmem>>, %arg7: memref<8x72xbf16, #tpu.memory_space<vmem>>, %arg8: memref<8x1xf32, #tpu.memory_space<vmem>>, %arg9: memref<1x16x256xbf16, #tpu.memory_space<vmem>>, %arg10: memref<8x290xbf16, #tpu.memory_space<vmem>>, %arg11: memref<72x256xbf16, #tpu.memory_space<vmem>>) attributes {dimension_semantics = [#tpu.dimension_semantics<parallel>], iteration_bounds = array<i64: 2>, scalar_prefetch = 0 : i64, scratch_operands = 2 : i64, tpu.core_type = #tpu.core_type<tc>, window_params = [{transform_indices = @transform_0, window_bounds = array<i64: 1, 4, 256>}, {pipeline_mode = #tpu.pipeline_mode<synchronous>, transform_indices = @transform_1, window_bounds = array<i64: 9, 256>}, {pipeline_mode = #tpu.pipeline_mode<synchronous>, transform_indices = @transform_2, window_bounds = array<i64: 8, 4>}, {pipeline_mode = #tpu.pipeline_mode<synchronous>, transform_indices = @transform_3, window_bounds = array<i64: 8, 1>}, {pipeline_mode = #tpu.pipeline_mode<synchronous>, transform_indices = @transform_4, window_bounds = array<i64: 8, 8>}, {pipeline_mode = #tpu.pipeline_mode<synchronous>, transform_indices = @transform_5, window_bounds = array<i64: 8, 1>}, {pipeline_mode = #tpu.pipeline_mode<synchronous>, transform_indices = @transform_6, window_bounds = array<i64: 8, 72>}, {pipeline_mode = #tpu.pipeline_mode<synchronous>, transform_indices = @transform_7, window_bounds = array<i64: 8, 1>}, {transform_indices = @transform_8, window_bounds = array<i64: 1, 16, 256>}]} {
    %c0 = arith.constant 0 : index
    %c0_0 = arith.constant 0 : index
    %c0_1 = arith.constant 0 : index
    %0 = vector.load %arg1[%c0, %c0_0, %c0_1] : memref<1x4x256xf32, #tpu.memory_space<vmem>>, vector<1x4x256xf32>
    %1 = vector.shape_cast %0 : vector<1x4x256xf32> to vector<4x256xf32>
    %2 = arith.truncf %1 : vector<4x256xf32> to vector<4x256xbf16>
    %c0_2 = arith.constant 0 : index
    %c0_3 = arith.constant 0 : index
    %3 = vector.load %arg3[%c0_2, %c0_3] : memref<8x4xbf16, #tpu.memory_space<vmem>>, vector<8x4xbf16>
    %cst = arith.constant dense<0.000000e+00> : vector<8x256xf32>
    %4 = tpu.matmul %3, %2, %cst {dimension_numbers = #tpu.dot_dimension_numbers<[1], [0], [0], [1], [0, 0, 1, 1], [], []>} : vector<8x4xbf16>, vector<4x256xbf16>, vector<8x256xf32> -> vector<8x256xf32>
    %c0_4 = arith.constant 0 : index
    %c0_5 = arith.constant 0 : index
    %5 = vector.load %arg4[%c0_4, %c0_5] : memref<8x1xf32, #tpu.memory_space<vmem>>, vector<8x1xf32>
    %6 = vector.broadcast %5 : vector<8x1xf32> to vector<8x256xf32>
    %7 = arith.addf %4, %6 : vector<8x256xf32>
    %cst_6 = arith.constant 0.000000e+00 : f32
    %8 = vector.broadcast %cst_6 : f32 to vector<8x256xf32>
    %9 = arith.maximumf %7, %8 : vector<8x256xf32>
    %10 = arith.truncf %9 : vector<8x256xf32> to vector<8x256xbf16>
    %c0_7 = arith.constant 0 : index
    %c0_8 = arith.constant 0 : index
    %11 = vector.load %arg5[%c0_7, %c0_8] : memref<8x8xbf16, #tpu.memory_space<vmem>>, vector<8x8xbf16>
    %cst_9 = arith.constant dense<0.000000e+00> : vector<8x256xf32>
    %12 = tpu.matmul %11, %10, %cst_9 {dimension_numbers = #tpu.dot_dimension_numbers<[1], [0], [0], [1], [0, 0, 1, 1], [], []>} : vector<8x8xbf16>, vector<8x256xbf16>, vector<8x256xf32> -> vector<8x256xf32>
    %c0_10 = arith.constant 0 : index
    %c0_11 = arith.constant 0 : index
    %13 = vector.load %arg6[%c0_10, %c0_11] : memref<8x1xf32, #tpu.memory_space<vmem>>, vector<8x1xf32>
    %14 = vector.broadcast %13 : vector<8x1xf32> to vector<8x256xf32>
    %15 = arith.addf %12, %14 : vector<8x256xf32>
    %cst_12 = arith.constant 0.000000e+00 : f32
    %16 = vector.broadcast %cst_12 : f32 to vector<8x256xf32>
    %17 = arith.maximumf %15, %16 : vector<8x256xf32>
    %cst_13 = arith.constant 0.000000e+00 : bf16
    %18 = vector.broadcast %cst_13 : bf16 to vector<8x17xbf16>
    %c0_14 = arith.constant 0 : index
    %c0_15 = arith.constant 0 : index
    %19 = vector.load %arg10[%c0_14, %c0_15] : memref<8x290xbf16, #tpu.memory_space<vmem>>, vector<8x17xbf16>
    tpu.vector_store %arg10[%c0_14, %c0_15], %18 {strides = array<i32>} : memref<8x290xbf16, #tpu.memory_space<vmem>>, vector<8x17xbf16>,
    %c0_16 = arith.constant 0 : index
    %c273 = arith.constant 273 : index
    %20 = vector.load %arg10[%c0_16, %c273] : memref<8x290xbf16, #tpu.memory_space<vmem>>, vector<8x17xbf16>
    tpu.vector_store %arg10[%c0_16, %c273], %18 {strides = array<i32>} : memref<8x290xbf16, #tpu.memory_space<vmem>>, vector<8x17xbf16>,
    %c0_17 = arith.constant 0 : index
    %c17 = arith.constant 17 : index
    %21 = vector.load %arg10[%c0_17, %c17] : memref<8x290xbf16, #tpu.memory_space<vmem>>, vector<8x256xbf16>
    tpu.vector_store %arg10[%c0_17, %c17], %10 {strides = array<i32>} : memref<8x290xbf16, #tpu.memory_space<vmem>>, vector<8x256xbf16>,
    %c0_18 = arith.constant 0 : index
    %c0_19 = arith.constant 0 : index
    %22 = vector.load %arg10[%c0_18, %c0_19] : memref<8x290xbf16, #tpu.memory_space<vmem>>, vector<8x256xbf16>
    %c0_20 = arith.constant 0 : index
    %c0_21 = arith.constant 0 : index
    %23 = vector.load %arg2[%c0_20, %c0_21] : memref<9x256xbf16, #tpu.memory_space<vmem>>, vector<1x256xbf16>
    %24 = vector.broadcast %23 : vector<1x256xbf16> to vector<8x256xbf16>
    %25 = arith.mulf %22, %24 : vector<8x256xbf16>
    %c0_22 = arith.constant 0 : index
    %c0_23 = arith.constant 0 : index
    %26 = vector.load %arg11[%c0_22, %c0_23] : memref<72x256xbf16, #tpu.memory_space<vmem>>, vector<8x256xbf16>
    tpu.vector_store %arg11[%c0_22, %c0_23], %25 {strides = array<i32>} : memref<72x256xbf16, #tpu.memory_space<vmem>>, vector<8x256xbf16>,
    %c0_24 = arith.constant 0 : index
    %c1 = arith.constant 1 : index
    %27 = vector.load %arg10[%c0_24, %c1] : memref<8x290xbf16, #tpu.memory_space<vmem>>, vector<8x256xbf16>
    %c1_25 = arith.constant 1 : index
    %c0_26 = arith.constant 0 : index
    %28 = vector.load %arg2[%c1_25, %c0_26] : memref<9x256xbf16, #tpu.memory_space<vmem>>, vector<1x256xbf16>
    %29 = vector.broadcast %28 : vector<1x256xbf16> to vector<8x256xbf16>
    %30 = arith.mulf %27, %29 : vector<8x256xbf16>
    %c8 = arith.constant 8 : index
    %c0_27 = arith.constant 0 : index
    %31 = vector.load %arg11[%c8, %c0_27] : memref<72x256xbf16, #tpu.memory_space<vmem>>, vector<8x256xbf16>
    tpu.vector_store %arg11[%c8, %c0_27], %30 {strides = array<i32>} : memref<72x256xbf16, #tpu.memory_space<vmem>>, vector<8x256xbf16>,
    %c0_28 = arith.constant 0 : index
    %c2 = arith.constant 2 : index
    %32 = vector.load %arg10[%c0_28, %c2] : memref<8x290xbf16, #tpu.memory_space<vmem>>, vector<8x256xbf16>
    %c2_29 = arith.constant 2 : index
    %c0_30 = arith.constant 0 : index
    %33 = vector.load %arg2[%c2_29, %c0_30] : memref<9x256xbf16, #tpu.memory_space<vmem>>, vector<1x256xbf16>
    %34 = vector.broadcast %33 : vector<1x256xbf16> to vector<8x256xbf16>
    %35 = arith.mulf %32, %34 : vector<8x256xbf16>
    %c16 = arith.constant 16 : index
    %c0_31 = arith.constant 0 : index
    %36 = vector.load %arg11[%c16, %c0_31] : memref<72x256xbf16, #tpu.memory_space<vmem>>, vector<8x256xbf16>
    tpu.vector_store %arg11[%c16, %c0_31], %35 {strides = array<i32>} : memref<72x256xbf16, #tpu.memory_space<vmem>>, vector<8x256xbf16>,
    %c0_32 = arith.constant 0 : index
    %c16_33 = arith.constant 16 : index
    %37 = vector.load %arg10[%c0_32, %c16_33] : memref<8x290xbf16, #tpu.memory_space<vmem>>, vector<8x256xbf16>
    %c3 = arith.constant 3 : index
    %c0_34 = arith.constant 0 : index
    %38 = vector.load %arg2[%c3, %c0_34] : memref<9x256xbf16, #tpu.memory_space<vmem>>, vector<1x256xbf16>
    %39 = vector.broadcast %38 : vector<1x256xbf16> to vector<8x256xbf16>
    %40 = arith.mulf %37, %39 : vector<8x256xbf16>
    %c24 = arith.constant 24 : index
    %c0_35 = arith.constant 0 : index
    %41 = vector.load %arg11[%c24, %c0_35] : memref<72x256xbf16, #tpu.memory_space<vmem>>, vector<8x256xbf16>
    tpu.vector_store %arg11[%c24, %c0_35], %40 {strides = array<i32>} : memref<72x256xbf16, #tpu.memory_space<vmem>>, vector<8x256xbf16>,
    %c32 = arith.constant 32 : index
    %c0_36 = arith.constant 0 : index
    %42 = vector.load %arg11[%c32, %c0_36] : memref<72x256xbf16, #tpu.memory_space<vmem>>, vector<8x256xbf16>
    tpu.vector_store %arg11[%c32, %c0_36], %10 {strides = array<i32>} : memref<72x256xbf16, #tpu.memory_space<vmem>>, vector<8x256xbf16>,
    %c0_37 = arith.constant 0 : index
    %c18 = arith.constant 18 : index
    %43 = vector.load %arg10[%c0_37, %c18] : memref<8x290xbf16, #tpu.memory_space<vmem>>, vector<8x256xbf16>
    %c5 = arith.constant 5 : index
    %c0_38 = arith.constant 0 : index
    %44 = vector.load %arg2[%c5, %c0_38] : memref<9x256xbf16, #tpu.memory_space<vmem>>, vector<1x256xbf16>
    %45 = vector.broadcast %44 : vector<1x256xbf16> to vector<8x256xbf16>
    %46 = arith.mulf %43, %45 : vector<8x256xbf16>
    %c40 = arith.constant 40 : index
    %c0_39 = arith.constant 0 : index
    %47 = vector.load %arg11[%c40, %c0_39] : memref<72x256xbf16, #tpu.memory_space<vmem>>, vector<8x256xbf16>
    tpu.vector_store %arg11[%c40, %c0_39], %46 {strides = array<i32>} : memref<72x256xbf16, #tpu.memory_space<vmem>>, vector<8x256xbf16>,
    %c0_40 = arith.constant 0 : index
    %c32_41 = arith.constant 32 : index
    %48 = vector.load %arg10[%c0_40, %c32_41] : memref<8x290xbf16, #tpu.memory_space<vmem>>, vector<8x256xbf16>
    %c6 = arith.constant 6 : index
    %c0_42 = arith.constant 0 : index
    %49 = vector.load %arg2[%c6, %c0_42] : memref<9x256xbf16, #tpu.memory_space<vmem>>, vector<1x256xbf16>
    %50 = vector.broadcast %49 : vector<1x256xbf16> to vector<8x256xbf16>
    %51 = arith.mulf %48, %50 : vector<8x256xbf16>
    %c48 = arith.constant 48 : index
    %c0_43 = arith.constant 0 : index
    %52 = vector.load %arg11[%c48, %c0_43] : memref<72x256xbf16, #tpu.memory_space<vmem>>, vector<8x256xbf16>
    tpu.vector_store %arg11[%c48, %c0_43], %51 {strides = array<i32>} : memref<72x256xbf16, #tpu.memory_space<vmem>>, vector<8x256xbf16>,
    %c0_44 = arith.constant 0 : index
    %c33 = arith.constant 33 : index
    %53 = vector.load %arg10[%c0_44, %c33] : memref<8x290xbf16, #tpu.memory_space<vmem>>, vector<8x256xbf16>
    %c7 = arith.constant 7 : index
    %c0_45 = arith.constant 0 : index
    %54 = vector.load %arg2[%c7, %c0_45] : memref<9x256xbf16, #tpu.memory_space<vmem>>, vector<1x256xbf16>
    %55 = vector.broadcast %54 : vector<1x256xbf16> to vector<8x256xbf16>
    %56 = arith.mulf %53, %55 : vector<8x256xbf16>
    %c56 = arith.constant 56 : index
    %c0_46 = arith.constant 0 : index
    %57 = vector.load %arg11[%c56, %c0_46] : memref<72x256xbf16, #tpu.memory_space<vmem>>, vector<8x256xbf16>
    tpu.vector_store %arg11[%c56, %c0_46], %56 {strides = array<i32>} : memref<72x256xbf16, #tpu.memory_space<vmem>>, vector<8x256xbf16>,
    %c0_47 = arith.constant 0 : index
    %c34 = arith.constant 34 : index
    %58 = vector.load %arg10[%c0_47, %c34] : memref<8x290xbf16, #tpu.memory_space<vmem>>, vector<8x256xbf16>
    %c8_48 = arith.constant 8 : index
    %c0_49 = arith.constant 0 : index
    %59 = vector.load %arg2[%c8_48, %c0_49] : memref<9x256xbf16, #tpu.memory_space<vmem>>, vector<1x256xbf16>
    %60 = vector.broadcast %59 : vector<1x256xbf16> to vector<8x256xbf16>
    %61 = arith.mulf %58, %60 : vector<8x256xbf16>
    %c64 = arith.constant 64 : index
    %c0_50 = arith.constant 0 : index
    %62 = vector.load %arg11[%c64, %c0_50] : memref<72x256xbf16, #tpu.memory_space<vmem>>, vector<8x256xbf16>
    tpu.vector_store %arg11[%c64, %c0_50], %61 {strides = array<i32>} : memref<72x256xbf16, #tpu.memory_space<vmem>>, vector<8x256xbf16>,
    %c0_51 = arith.constant 0 : index
    %c0_52 = arith.constant 0 : index
    %63 = vector.load %arg7[%c0_51, %c0_52] : memref<8x72xbf16, #tpu.memory_space<vmem>>, vector<8x72xbf16>
    %c0_53 = arith.constant 0 : index
    %c0_54 = arith.constant 0 : index
    %64 = vector.load %arg11[%c0_53, %c0_54] : memref<72x256xbf16, #tpu.memory_space<vmem>>, vector<72x256xbf16>
    %cst_55 = arith.constant dense<0.000000e+00> : vector<8x256xf32>
    %65 = tpu.matmul %63, %64, %cst_55 {dimension_numbers = #tpu.dot_dimension_numbers<[1], [0], [0], [1], [0, 0, 1, 1], [], []>} : vector<8x72xbf16>, vector<72x256xbf16>, vector<8x256xf32> -> vector<8x256xf32>
    %c0_56 = arith.constant 0 : index
    %c0_57 = arith.constant 0 : index
    %66 = vector.load %arg8[%c0_56, %c0_57] : memref<8x1xf32, #tpu.memory_space<vmem>>, vector<8x1xf32>
    %67 = vector.broadcast %66 : vector<8x1xf32> to vector<8x256xf32>
    %68 = arith.addf %65, %67 : vector<8x256xf32>
    %cst_58 = arith.constant 0.000000e+00 : f32
    %69 = vector.broadcast %cst_58 : f32 to vector<8x256xf32>
    %70 = arith.maximumf %68, %69 : vector<8x256xf32>
    %71 = tpu.concatenate %17, %70 in 0 : vector<8x256xf32>, vector<8x256xf32> -> vector<16x256xf32>
    %72 = arith.truncf %71 : vector<16x256xf32> to vector<16x256xbf16>
    %c0_59 = arith.constant 0 : index
    %c0_60 = arith.constant 0 : index
    %c0_61 = arith.constant 0 : index
    %73 = vector.load %arg9[%c0_59, %c0_60, %c0_61] : memref<1x16x256xbf16, #tpu.memory_space<vmem>>, vector<1x16x256xbf16>
    %74 = vector.shape_cast %73 : vector<1x16x256xbf16> to vector<16x256xbf16>
    %75 = vector.shape_cast %72 : vector<16x256xbf16> to vector<1x16x256xbf16>
    tpu.vector_store %arg9[%c0_59, %c0_60, %c0_61], %75 {strides = array<i32>} : memref<1x16x256xbf16, #tpu.memory_space<vmem>>, vector<1x16x256xbf16>,
    return
  }
  func.func @transform_0(%arg0: i32) -> (i32, i32, i32) {
    %c0_i32 = arith.constant 0 : i32
    %c0_i32_0 = arith.constant 0 : i32
    %c0_i32_1 = arith.constant 0 : i32
    return %arg0, %c0_i32, %c0_i32_0 : i32, i32, i32
  }
  func.func @transform_1(%arg0: i32) -> (i32, i32) {
    %c0_i32 = arith.constant 0 : i32
    %c0_i32_0 = arith.constant 0 : i32
    %c0_i32_1 = arith.constant 0 : i32
    return %c0_i32, %c0_i32_0 : i32, i32
  }
  func.func @transform_2(%arg0: i32) -> (i32, i32) {
    %c0_i32 = arith.constant 0 : i32
    %c0_i32_0 = arith.constant 0 : i32
    %c0_i32_1 = arith.constant 0 : i32
    return %c0_i32, %c0_i32_0 : i32, i32
  }
  func.func @transform_3(%arg0: i32) -> (i32, i32) {
    %c0_i32 = arith.constant 0 : i32
    %c0_i32_0 = arith.constant 0 : i32
    %c0_i32_1 = arith.constant 0 : i32
    return %c0_i32, %c0_i32_0 : i32, i32
  }
  func.func @transform_4(%arg0: i32) -> (i32, i32) {
    %c0_i32 = arith.constant 0 : i32
    %c0_i32_0 = arith.constant 0 : i32
    %c0_i32_1 = arith.constant 0 : i32
    return %c0_i32, %c0_i32_0 : i32, i32
  }
  func.func @transform_5(%arg0: i32) -> (i32, i32) {
    %c0_i32 = arith.constant 0 : i32
    %c0_i32_0 = arith.constant 0 : i32
    %c0_i32_1 = arith.constant 0 : i32
    return %c0_i32, %c0_i32_0 : i32, i32
  }
  func.func @transform_6(%arg0: i32) -> (i32, i32) {
    %c0_i32 = arith.constant 0 : i32
    %c0_i32_0 = arith.constant 0 : i32
    %c0_i32_1 = arith.constant 0 : i32
    return %c0_i32, %c0_i32_0 : i32, i32
  }
  func.func @transform_7(%arg0: i32) -> (i32, i32) {
    %c0_i32 = arith.constant 0 : i32
    %c0_i32_0 = arith.constant 0 : i32
    %c0_i32_1 = arith.constant 0 : i32
    return %c0_i32, %c0_i32_0 : i32, i32
  }
  func.func @transform_8(%arg0: i32) -> (i32, i32, i32) {
    %c0_i32 = arith.constant 0 : i32
    %c0_i32_0 = arith.constant 0 : i32
    %c0_i32_1 = arith.constant 0 : i32
    return %arg0, %c0_i32, %c0_i32_0 : i32, i32, i32
  }
}

</mosaic_0001>

<llo_original>
// kernel: tpu_custom_call.1
$region0: #{tpu_custom_call.1}
  #allocation0 [shape = 'u32[]', space=smem, size = 0x4, offset = 0x4, fixed_abs, tag = 'smem constant byte address 0x4 - core index']
  #allocation1 [shape = 'u32[144,128]{1,0:T(1,128)}', space=vmem, size = 0x12000, scoped, tag = 'internal scratch']
  #allocation2 [shape = 'bf16[8,290]{1,0:T(8,128)(2,1)}', space=vmem, size = 0x1800, scoped, tag = 'scratch operand']
  #allocation3 [shape = 'bf16[72,256]{1,0:T(8,128)(2,1)}', space=vmem, size = 0x9000, scoped, tag = 'scratch operand']
  %s0 = inlined_call_operand.vmem [shape: f32[2,4,256], index: 0, kind: input, shape index: {}]
  %s1 = inlined_call_operand.vmem [shape: bf16[9,256], index: 1, kind: input, shape index: {}]
  %s2 = inlined_call_operand.vmem [shape: bf16[8,4], index: 2, kind: input, shape index: {}]
  %s3 = inlined_call_operand.vmem [shape: f32[8,1], index: 3, kind: input, shape index: {}]
  %s4 = inlined_call_operand.vmem [shape: bf16[8,8], index: 4, kind: input, shape index: {}]
  %s5 = inlined_call_operand.vmem [shape: f32[8,1], index: 5, kind: input, shape index: {}]
  %s6 = inlined_call_operand.vmem [shape: bf16[8,72], index: 6, kind: input, shape index: {}]
  %s7 = inlined_call_operand.vmem [shape: f32[8,1], index: 7, kind: input, shape index: {}]
  %s8 = inlined_call_operand.hbm [shape: bf16[2,16,256], index: 8, kind: output, shape index: {}]
  %s9 = sld [smem:[#allocation0]]
  $region65: #{tpu_custom_call.1} parent=0
    _
  %s11 = ssub.s32 1, %s9
  %s12 = scalar_select 0, %s11, %s9
  $region1: #{tpu_custom_call.1} parent=0
    #allocation4 [shape = 'u8[16384]{0}', space=vmem, size = 0x4000, scoped, tag = 'output window, operand 0']
    #allocation5 [shape = 's32[2]{0}', space=sflag, size = 0x8, scoped, tag = 'scoped memory for tpu_custom_call.1']
    %13 = vsyncpa [#allocation5], 0
    %s14 = scalar_lea.sflag [#allocation5], 1
    %15 = vsyncpa %s14, 0
    loop: start=0, step=1, limit=4
    $region2: #{tpu_custom_call.1} parent=1 // loop_pre_header
      _
    $region3: #{tpu_custom_call.1} parent=1 // loop_header
      %s17 = sphi 0, %s21
      %p18 = scmp.ge.s32.totalorder %s17, 4
      %s27 = sphi 0, %s29
      %s30 = sphi 0, %s27
      %s31 = sphi 0, %s30
      %s47 = sphi 0, %s31
      %s51 = sphi 0, %s51
      %s53 = sphi 0, %s51
      %s54 = sphi 0, %s53
      %s68 = sphi 0, %s54
      %s72 = sphi 0, %s72
      %s74 = sphi 0, %s72
      %s75 = sphi 0, %s74
      %s89 = sphi 0, %s75
      %s93 = sphi 0, %s93
      %s95 = sphi 0, %s93
      %s96 = sphi 0, %s95
      %s110 = sphi 0, %s96
      %s114 = sphi 0, %s114
      %s116 = sphi 0, %s114
      %s117 = sphi 0, %s116
      %s131 = sphi 0, %s117
      %s135 = sphi 0, %s135
      %s137 = sphi 0, %s135
      %s138 = sphi 0, %s137
      %s152 = sphi 0, %s138
      %s156 = sphi 0, %s156
      %s158 = sphi 0, %s156
      %s159 = sphi 0, %s158
      %s173 = sphi 0, %s159
      %s177 = sphi 0, %s177
      %s179 = sphi 0, %s177
      %s180 = sphi 0, %s179
      %s194 = sphi 0, %s180
      %s200 = sphi 0, %s202
      %s203 = sphi 0, %s200
      %s204 = sphi 0, %s203
      %s220 = sphi 0, %s204
    $region4: #{tpu_custom_call.1} parent=1 // loop_header_branch
      %20 = sbr.rel (%p18) target = $region8
    $region5: #{tpu_custom_call.1} parent=1 // loop_body
      %s22 = ssub.s32 %s17, 1
      %s23 = ssub.s32 %s17, 2
      %s24 = sadd.s32 %s17, 1
      %s25 = ssub.s32 %s17, %s24
      %p26 = scmp.eq.s32.totalorder %s25, 0
      %s28 = sadd.s32 %s27, 1
      %s29 = scalar_select %p26, %s27, %s28
      %p32 = pneg %p26
      %p33 = scmp.eq.s32.totalorder %s17, 1
      %p34 = por %p32, %p33
      %p35 = scmp.ne.s32.totalorder %s27, %s30
      %p36 = scmp.eq.s32.totalorder %s17, 0
      %p37 = por %p35, %p36
      %p38 = scmp.ne.s32.totalorder %s27, %s30
      %p39 = scmp.eq.s32.totalorder %s22, 1
      %p40 = por %p38, %p39
      %p41 = scmp.ne.s32.totalorder %s30, %s31
      %p42 = scmp.eq.s32.totalorder %s22, 0
      %p43 = por %p41, %p42
      %p44 = scmp.ne.s32.totalorder %s30, %s31
      %p45 = scmp.eq.s32.totalorder %s23, 1
      %p46 = por %p44, %p45
      %p48 = scmp.ne.s32.totalorder %s31, %s47
      %p49 = scmp.eq.s32.totalorder %s23, 0
      %p50 = por %p48, %p49
      %s52 = sadd.s32 %s51, 1
      %p55 = scmp.eq.s32.totalorder %s17, 1
      %p56 = scmp.ne.s32.totalorder %s51, %s53
      %p57 = scmp.eq.s32.totalorder %s17, 0
      %p58 = por %p56, %p57
      %p59 = scmp.ne.s32.totalorder %s51, %s53
      %p60 = scmp.eq.s32.totalorder %s22, 1
      %p61 = por %p59, %p60
      %p62 = scmp.ne.s32.totalorder %s53, %s54
      %p63 = scmp.eq.s32.totalorder %s22, 0
      %p64 = por %p62, %p63
      %p65 = scmp.ne.s32.totalorder %s53, %s54
      %p66 = scmp.eq.s32.totalorder %s23, 1
      %p67 = por %p65, %p66
      %p69 = scmp.ne.s32.totalorder %s54, %s68
      %p70 = scmp.eq.s32.totalorder %s23, 0
      %p71 = por %p69, %p70
      %s73 = sadd.s32 %s72, 1
      %p76 = scmp.eq.s32.totalorder %s17, 1
      %p77 = scmp.ne.s32.totalorder %s72, %s74
      %p78 = scmp.eq.s32.totalorder %s17, 0
      %p79 = por %p77, %p78
      %p80 = scmp.ne.s32.totalorder %s72, %s74
      %p81 = scmp.eq.s32.totalorder %s22, 1
      %p82 = por %p80, %p81
      %p83 = scmp.ne.s32.totalorder %s74, %s75
      %p84 = scmp.eq.s32.totalorder %s22, 0
      %p85 = por %p83, %p84
      %p86 = scmp.ne.s32.totalorder %s74, %s75
      %p87 = scmp.eq.s32.totalorder %s23, 1
      %p88 = por %p86, %p87
      %p90 = scmp.ne.s32.totalorder %s75, %s89
      %p91 = scmp.eq.s32.totalorder %s23, 0
      %p92 = por %p90, %p91
      %s94 = sadd.s32 %s93, 1
      %p97 = scmp.eq.s32.totalorder %s17, 1
      %p98 = scmp.ne.s32.totalorder %s93, %s95
      %p99 = scmp.eq.s32.totalorder %s17, 0
      %p100 = por %p98, %p99
      %p101 = scmp.ne.s32.totalorder %s93, %s95
      %p102 = scmp.eq.s32.totalorder %s22, 1
      %p103 = por %p101, %p102
      %p104 = scmp.ne.s32.totalorder %s95, %s96
      %p105 = scmp.eq.s32.totalorder %s22, 0
      %p106 = por %p104, %p105
      %p107 = scmp.ne.s32.totalorder %s95, %s96
      %p108 = scmp.eq.s32.totalorder %s23, 1
      %p109 = por %p107, %p108
      %p111 = scmp.ne.s32.totalorder %s96, %s110
      %p112 = scmp.eq.s32.totalorder %s23, 0
      %p113 = por %p111, %p112
      %s115 = sadd.s32 %s114, 1
      %p118 = scmp.eq.s32.totalorder %s17, 1
      %p119 = scmp.ne.s32.totalorder %s114, %s116
      %p120 = scmp.eq.s32.totalorder %s17, 0
      %p121 = por %p119, %p120
      %p122 = scmp.ne.s32.totalorder %s114, %s116
      %p123 = scmp.eq.s32.totalorder %s22, 1
      %p124 = por %p122, %p123
      %p125 = scmp.ne.s32.totalorder %s116, %s117
      %p126 = scmp.eq.s32.totalorder %s22, 0
      %p127 = por %p125, %p126
      %p128 = scmp.ne.s32.totalorder %s116, %s117
      %p129 = scmp.eq.s32.totalorder %s23, 1
      %p130 = por %p128, %p129
      %p132 = scmp.ne.s32.totalorder %s117, %s131
      %p133 = scmp.eq.s32.totalorder %s23, 0
      %p134 = por %p132, %p133
      %s136 = sadd.s32 %s135, 1
      %p139 = scmp.eq.s32.totalorder %s17, 1
      %p140 = scmp.ne.s32.totalorder %s135, %s137
      %p141 = scmp.eq.s32.totalorder %s17, 0
      %p142 = por %p140, %p141
      %p143 = scmp.ne.s32.totalorder %s135, %s137
      %p144 = scmp.eq.s32.totalorder %s22, 1
      %p145 = por %p143, %p144
      %p146 = scmp.ne.s32.totalorder %s137, %s138
      %p147 = scmp.eq.s32.totalorder %s22, 0
      %p148 = por %p146, %p147
      %p149 = scmp.ne.s32.totalorder %s137, %s138
      %p150 = scmp.eq.s32.totalorder %s23, 1
      %p151 = por %p149, %p150
      %p153 = scmp.ne.s32.totalorder %s138, %s152
      %p154 = scmp.eq.s32.totalorder %s23, 0
      %p155 = por %p153, %p154
      %s157 = sadd.s32 %s156, 1
      %p160 = scmp.eq.s32.totalorder %s17, 1
      %p161 = scmp.ne.s32.totalorder %s156, %s158
      %p162 = scmp.eq.s32.totalorder %s17, 0
      %p163 = por %p161, %p162
      %p164 = scmp.ne.s32.totalorder %s156, %s158
      %p165 = scmp.eq.s32.totalorder %s22, 1
      %p166 = por %p164, %p165
      %p167 = scmp.ne.s32.totalorder %s158, %s159
      %p168 = scmp.eq.s32.totalorder %s22, 0
      %p169 = por %p167, %p168
      %p170 = scmp.ne.s32.totalorder %s158, %s159
      %p171 = scmp.eq.s32.totalorder %s23, 1
      %p172 = por %p170, %p171
      %p174 = scmp.ne.s32.totalorder %s159, %s173
      %p175 = scmp.eq.s32.totalorder %s23, 0
      %p176 = por %p174, %p175
      %s178 = sadd.s32 %s177, 1
      %p181 = scmp.eq.s32.totalorder %s17, 1
      %p182 = scmp.ne.s32.totalorder %s177, %s179
      %p183 = scmp.eq.s32.totalorder %s17, 0
      %p184 = por %p182, %p183
      %p185 = scmp.ne.s32.totalorder %s177, %s179
      %p186 = scmp.eq.s32.totalorder %s22, 1
      %p187 = por %p185, %p186
      %p188 = scmp.ne.s32.totalorder %s179, %s180
      %p189 = scmp.eq.s32.totalorder %s22, 0
      %p190 = por %p188, %p189
      %p191 = scmp.ne.s32.totalorder %s179, %s180
      %p192 = scmp.eq.s32.totalorder %s23, 1
      %p193 = por %p191, %p192
      %p195 = scmp.ne.s32.totalorder %s180, %s194
      %p196 = scmp.eq.s32.totalorder %s23, 0
      %p197 = por %p195, %p196
      %s198 = ssub.s32 %s17, %s24
      %p199 = scmp.eq.s32.totalorder %s198, 0
      %s201 = sadd.s32 %s200, 1
      %s202 = scalar_select %p199, %s200, %s201
      %p205 = pneg %p199
      %p206 = scmp.eq.s32.totalorder %s17, 1
      %p207 = por %p205, %p206
      %p208 = scmp.ne.s32.totalorder %s200, %s203
      %p209 = scmp.eq.s32.totalorder %s17, 0
      %p210 = por %p208, %p209
      %p211 = scmp.ne.s32.totalorder %s200, %s203
      %p212 = scmp.eq.s32.totalorder %s22, 1
      %p213 = por %p211, %p212
      %p214 = scmp.ne.s32.totalorder %s203, %s204
      %p215 = scmp.eq.s32.totalorder %s22, 0
      %p216 = por %p214, %p215
      %p217 = scmp.ne.s32.totalorder %s203, %s204
      %p218 = scmp.eq.s32.totalorder %s23, 1
      %p219 = por %p217, %p218
      %p221 = scmp.ne.s32.totalorder %s204, %s220
      %p222 = scmp.eq.s32.totalorder %s23, 0
      %p223 = por %p221, %p222
      %p224 = scmp.le.s32.totalorder 1, %s17
      %p225 = scmp.lt.s32.totalorder %s17, 3
      %p226 = pnand %p224, %p225
      %p227 = pneg %p226
      // Predicated region
      $region9: #{tpu_custom_call.1} parent=5 // pred_check
        _
      $region10: #{tpu_custom_call.1} parent=5 // pred_check_branch
        %229 = sbr.rel (%p226) target = $region12
      $region11: #{tpu_custom_call.1} parent=5 // pred_region
        %s230 = ssub.s32 %s17, 1
        // Predicated region
        $region13: #{tpu_custom_call.1} parent=11 // pred_check
          %p231 = pneg %p64
        $region14: #{tpu_custom_call.1} parent=11 // pred_check_branch
          %233 = sbr.rel (%p231) target = $region16
        $region15: #{tpu_custom_call.1} parent=11 // pred_region
          _
        $region16: #{tpu_custom_call.1} parent=11 // pred_fallthru
          _
        // Predicated region
        $region17: #{tpu_custom_call.1} parent=11 // pred_check
          %p234 = pneg %p85
        $region18: #{tpu_custom_call.1} parent=11 // pred_check_branch
          %236 = sbr.rel (%p234) target = $region20
        $region19: #{tpu_custom_call.1} parent=11 // pred_region
          _
        $region20: #{tpu_custom_call.1} parent=11 // pred_fallthru
          _
        // Predicated region
        $region21: #{tpu_custom_call.1} parent=11 // pred_check
          %p237 = pneg %p106
        $region22: #{tpu_custom_call.1} parent=11 // pred_check_branch
          %239 = sbr.rel (%p237) target = $region24
        $region23: #{tpu_custom_call.1} parent=11 // pred_region
          _
        $region24: #{tpu_custom_call.1} parent=11 // pred_fallthru
          _
        // Predicated region
        $region25: #{tpu_custom_call.1} parent=11 // pred_check
          %p240 = pneg %p127
        $region26: #{tpu_custom_call.1} parent=11 // pred_check_branch
          %242 = sbr.rel (%p240) target = $region28
        $region27: #{tpu_custom_call.1} parent=11 // pred_region
          _
        $region28: #{tpu_custom_call.1} parent=11 // pred_fallthru
          _
        // Predicated region
        $region29: #{tpu_custom_call.1} parent=11 // pred_check
          %p243 = pneg %p148
        $region30: #{tpu_custom_call.1} parent=11 // pred_check_branch
          %245 = sbr.rel (%p243) target = $region32
        $region31: #{tpu_custom_call.1} parent=11 // pred_region
          _
        $region32: #{tpu_custom_call.1} parent=11 // pred_fallthru
          _
        // Predicated region
        $region33: #{tpu_custom_call.1} parent=11 // pred_check
          %p246 = pneg %p169
        $region34: #{tpu_custom_call.1} parent=11 // pred_check_branch
          %248 = sbr.rel (%p246) target = $region36
        $region35: #{tpu_custom_call.1} parent=11 // pred_region
          _
        $region36: #{tpu_custom_call.1} parent=11 // pred_fallthru
          _
        // Predicated region
        $region37: #{tpu_custom_call.1} parent=11 // pred_check
          %p249 = pneg %p190
        $region38: #{tpu_custom_call.1} parent=11 // pred_check_branch
          %251 = sbr.rel (%p249) target = $region40
        $region39: #{tpu_custom_call.1} parent=11 // pred_region
          _
        $region40: #{tpu_custom_call.1} parent=11 // pred_fallthru
          _
      $region12: #{tpu_custom_call.1} parent=5 // pred_fallthru
        _
      %p252 = scmp.lt.s32.totalorder %s17, 2
      // Predicated region
      $region41: #{tpu_custom_call.1} parent=5 // pred_check
        %p253 = pneg %p252
      $region42: #{tpu_custom_call.1} parent=5 // pred_check_branch
        %255 = sbr.rel (%p253) target = $region44
      $region43: #{tpu_custom_call.1} parent=5 // pred_region
        // Predicated region
        $region45: #{tpu_custom_call.1} parent=43 // pred_check
          %p256 = pneg %p37
        $region46: #{tpu_custom_call.1} parent=43 // pred_check_branch
          %258 = sbr.rel (%p256) target = $region48
        $region47: #{tpu_custom_call.1} parent=43 // pred_region
          %p259 = scmp.lt.s32.totalorder %s17, 1
          %s260 = scalar_select %p259, %s17, 1
          %s261 = smul.addr %s260, 2
          %s262 = smul.addr %s261, 4
          %s263 = scalar_lea.vmem %s0, %s262
        $region48: #{tpu_custom_call.1} parent=43 // pred_fallthru
          _
      $region44: #{tpu_custom_call.1} parent=5 // pred_fallthru
        _
      %p264 = scmp.le.s32.totalorder 1, %s17
      %p265 = scmp.lt.s32.totalorder %s17, 3
      %p266 = pnand %p264, %p265
      %p267 = pneg %p266
      // Predicated region
      $region49: #{tpu_custom_call.1} parent=5 // pred_check
        _
      $region50: #{tpu_custom_call.1} parent=5 // pred_check_branch
        %269 = sbr.rel (%p266) target = $region52
      $region51: #{tpu_custom_call.1} parent=5 // pred_region
        %s270 = ssub.s32 %s17, 1
        %p271 = scmp.lt.s32.totalorder %s22, 1
        %s272 = scalar_select %p271, %s22, 1
        %s273 = smul.addr %s272, 2
        %s274 = smul.addr %s273, 4
        %s275 = scalar_lea.vmem %s0, %s274
        %p276 = pneg %p43
        %p277 = pneg %p40
        %p278 = pneg %p64
        %p279 = pneg %p61
        %p280 = pneg %p85
        %p281 = pneg %p82
        %p282 = pneg %p106
        %p283 = pneg %p103
        %p284 = pneg %p127
        %p285 = pneg %p124
        %p286 = pneg %p148
        %p287 = pneg %p145
        %p288 = pneg %p169
        %p289 = pneg %p166
        %p290 = pneg %p190
        %p291 = pneg %p187
        %p292 = pneg %p216
        %p293 = pneg %p213
        %s294 = sand.u32 %s203, 1
        %s295 = scalar_lea.sflag [#allocation5], %s294
        %s296 = sand.u32 %s203, 1
        %s297 = smul.addr %s296, 16
        %s298 = scalar_lea.vmem [#allocation4], %s297
        %p299 = scmp.lt.s32.totalorder %s22, 1
        %s300 = scalar_select %p299, %s22, 1
        %s301 = smul.addr %s300, 2
        %s302 = smul.addr %s301, 4
        %s303 = scalar_lea.vmem %s0, %s302
        %v305 = vld [vmem:[%s303] sm:$0xff]
        %v307 = vcombine.high %v305, %v305
        %v309 = vpack.c.bf16 %v305, %v305
        %v310 = vpack.c.bf16 %v307, %v307
        %v311 = vld [vmem:[%s2] sm:$0xf]
        %v312 = vld [vmem:[%s3] sm:$0xff]
        %314 = vset.pattern.permute.xlu0 0
        %315 = vperm.xlu0 %314, %v312
        %v316 = vpop.permute.xlu0 %315
        %vm318 = vcmask 31744
        %v320 = vsel %vm318, %v311, 0
        %vm322 = vcmask 1041408
        %v324 = vsel %vm322, %v309, 0
        %v327 = vsel %vm322, %v310, 0
        %329 = vmatprep.subr.bf16.mxu0 %v327
        %330 = vmatpush1.bf16.msra.mxu0 %v324
        %331 = vmatprep.subr.bf16.mxu0 0
        %332 = vmatpush1.bf16.msra.mxu0 0
        %333 = vmatprep.subr.bf16.mxu0 0
        %334 = vmatpush1.bf16.msra.mxu0 0
        %335 = vmatprep.subr.bf16.mxu0 0
        %336 = vmatpush1.bf16.msra.mxu0 0
        %337 = vmatprep.subr.bf16.mxu0 0
        %338 = vmatpush1.bf16.msra.mxu0 0
        %339 = vmatprep.subr.bf16.mxu0 0
        %340 = vmatpush1.bf16.msra.mxu0 0
        %341 = vmatprep.subr.bf16.mxu0 0
        %342 = vmatpush1.bf16.msra.mxu0 0
        %343 = vmatprep.subr.bf16.mxu0 0
        %344 = vmatpush1.bf16.msra.mxu0 0
        %345 = vmatprep.subr.bf16.mxu0 0
        %346 = vmatpush1.bf16.msra.mxu0 0
        %347 = vmatprep.subr.bf16.mxu0 0
        %348 = vmatpush1.bf16.msra.mxu0 0
        %349 = vmatprep.subr.bf16.mxu0 0
        %350 = vmatpush1.bf16.msra.mxu0 0
        %351 = vmatprep.subr.bf16.mxu0 0
        %352 = vmatpush1.bf16.msra.mxu0 0
        %353 = vmatprep.subr.bf16.mxu0 0
        %354 = vmatpush1.bf16.msra.mxu0 0
        %355 = vmatprep.subr.bf16.mxu0 0
        %356 = vmatpush1.bf16.msra.mxu0 0
        %357 = vmatprep.subr.bf16.mxu0 0
        %358 = vmatpush1.bf16.msra.mxu0 0
        %359 = vmatprep.subr.bf16.mxu0 0
        %360 = vmatpush1.bf16.msra.mxu0 0
        %361 = vmatprep.mubr.bf16.mxu0 0
        %362 = vmatmul.mubr.bf16.gmra.mrb[0].mxu0 %v320
        %v363 = vpop.f32.mrb[0].mxu0
        %v364 = vadd.f32 %v316, %v363
        %v365 = vpop.f32.mrb[0].mxu0
        %v366 = vadd.f32 %v316, %v365
        %v367 = vpop.f32.mrb[0].mxu0
        %v368 = vpop.f32.mrb[0].mxu0
        %369 = vdwg.mxu0
        %v370 = vmax.f32 %v364, 0.0
        %v371 = vmax.f32 %v366, 0.0
        %v372 = vpack.c.bf16 %v370, %v370
        %v373 = vpack.c.bf16 %v371, %v371
        %v374 = vld [vmem:[%s4] sm:$0xf]
        %v375 = vld [vmem:[%s5] sm:$0xff]
        %377 = vset.pattern.permute.xlu0 0
        %378 = vperm.xlu0 %377, %v375
        %v379 = vpop.permute.xlu0 %378
        %vm381 = vcmask 64512
        %v383 = vsel %vm381, %v374, 0
        %vm385 = vcmask 1043456
        %v387 = vsel %vm385, %v372, 0
        %v390 = vsel %vm385, %v373, 0
        %392 = vmatprep.subr.bf16.mxu0 %v390
        %393 = vmatpush1.bf16.msra.mxu0 %v387
        %394 = vmatprep.subr.bf16.mxu0 0
        %395 = vmatpush1.bf16.msra.mxu0 0
        %396 = vmatprep.subr.bf16.mxu0 0
        %397 = vmatpush1.bf16.msra.mxu0 0
        %398 = vmatprep.subr.bf16.mxu0 0
        %399 = vmatpush1.bf16.msra.mxu0 0
        %400 = vmatprep.subr.bf16.mxu0 0
        %401 = vmatpush1.bf16.msra.mxu0 0
        %402 = vmatprep.subr.bf16.mxu0 0
        %403 = vmatpush1.bf16.msra.mxu0 0
        %404 = vmatprep.subr.bf16.mxu0 0
        %405 = vmatpush1.bf16.msra.mxu0 0
        %406 = vmatprep.subr.bf16.mxu0 0
        %407 = vmatpush1.bf16.msra.mxu0 0
        %408 = vmatprep.subr.bf16.mxu0 0
        %409 = vmatpush1.bf16.msra.mxu0 0
        %410 = vmatprep.subr.bf16.mxu0 0
        %411 = vmatpush1.bf16.msra.mxu0 0
        %412 = vmatprep.subr.bf16.mxu0 0
        %413 = vmatpush1.bf16.msra.mxu0 0
        %414 = vmatprep.subr.bf16.mxu0 0
        %415 = vmatpush1.bf16.msra.mxu0 0
        %416 = vmatprep.subr.bf16.mxu0 0
        %417 = vmatpush1.bf16.msra.mxu0 0
        %418 = vmatprep.subr.bf16.mxu0 0
        %419 = vmatpush1.bf16.msra.mxu0 0
        %420 = vmatprep.subr.bf16.mxu0 0
        %421 = vmatpush1.bf16.msra.mxu0 0
        %422 = vmatprep.subr.bf16.mxu0 0
        %423 = vmatpush1.bf16.msra.mxu0 0
        %424 = vmatprep.mubr.bf16.mxu0 0
        %425 = vmatmul.mubr.bf16.gmra.mrb[0].mxu0 %v383
        %v426 = vpop.f32.mrb[0].mxu0
        %v427 = vadd.f32 %v379, %v426
        %v428 = vpop.f32.mrb[0].mxu0
        %v429 = vadd.f32 %v379, %v428
        %v430 = vpop.f32.mrb[0].mxu0
        %v431 = vpop.f32.mrb[0].mxu0
        %432 = vdwg.mxu0
        %v433 = vmax.f32 %v427, 0.0
        %v434 = vmax.f32 %v429, 0.0
        %vm435 = vcmask 134144
        %436 = vst.msk [vmem:[#allocation2] sm:$0xf] %vm435, 0
        %vm437 = vcmask 273544
        %438 = vst.msk [vmem:[#allocation2 + $0x8] sm:$0xf] %vm437, 0
        %v441 = vunpack.c.l.b16 %v372
        %v442 = vunpack.c.l.b16 %v373
        %v443 = vpack.c.b16 %v442, %v441
        %444 = vrot.lane.b32.xlu0 %v443, 17
        %v445 = vpop.permute.xlu0 %444
        %v446 = vrot.slane %v445, 4
        %vm447 = vcmask 138240
        %v448 = vsel %vm447, %v446, %v445
        %vm451 = vcmask 1043592
        %vm452 = vcmask 1047556
        %vm453 = vmor %vm452, %vm451
        %454 = vst.msk [vmem:[#allocation2] sm:$0xff] %vm453, %v448
        %455 = vst.msk [vmem:[#allocation2 + $0x8] sm:$0xf] %vm435, %v446
        %v456 = vld [vmem:[#allocation2] sm:$0xff]
        %v457 = vld [vmem:[%s1] sm:$0x11]
        %v459 = vunpack.c.l.b16 %v457
        %v460 = vunpack.c.h.b16 %v457
        %v461 = vpack.c.b16 %v459, %v459
        %v462 = vpack.c.b16 %v460, %v460
        %v464 = vpack.i.b16 %v461, %v461
        %v466 = vlaneseq
        %v467 = vshrl.u32 %v466, 7
        %v468 = vsub.s32 0, %v467
        %v469 = vrot.slane %v464, %v468
        %v471 = vpack.i.b16 %v462, %v462
        %v473 = vlaneseq
        %v474 = vshrl.u32 %v473, 7
        %v475 = vsub.s32 0, %v474
        %v476 = vrot.slane %v471, %v475
        %v479 = vunpack.c.l.b16 %v469
        %v480 = vunpack.c.l.b16 %v476
        %v481 = vpack.c.b16 %v480, %v479
        %v483 = vmul.bf16 %v456, %v481
        %484 = vst [vmem:[#allocation3] sm:$0xff] %v483
        %v485 = vld [vmem:[#allocation2] sm:$0xff]
        %v486 = vld [vmem:[#allocation2 + $0x8] sm:$0xf]
        %v487 = vld [vmem:[%s1] sm:$0x11]
        %v489 = vunpack.c.l.b16 %v487
        %v490 = vunpack.c.h.b16 %v487
        %v491 = vpack.c.b16 %v489, %v489
        %v492 = vpack.c.b16 %v490, %v490
        %v494 = vshrl.u32 %v491, 16
        %v495 = vpack.i.b16 %v494, %v494
        %v497 = vlaneseq
        %v498 = vshrl.u32 %v497, 7
        %v499 = vsub.s32 0, %v498
        %v500 = vrot.slane %v495, %v499
        %v502 = vshrl.u32 %v492, 16
        %v503 = vpack.i.b16 %v502, %v502
        %v505 = vlaneseq
        %v506 = vshrl.u32 %v505, 7
        %v507 = vsub.s32 0, %v506
        %v508 = vrot.slane %v503, %v507
        %v511 = vunpack.c.l.b16 %v500
        %v512 = vunpack.c.l.b16 %v508
        %v513 = vpack.c.b16 %v512, %v511
        %514 = vrot.lane.b32.xlu0 %v513, 1
        %v515 = vpop.permute.xlu0 %514
        %v516 = vrot.slane %v515, 4
        %vm517 = vcmask 7168
        %v518 = vsel %vm517, %v516, %v515
        %v521 = vmul.bf16 %v485, %v518
        %v522 = vmul.bf16 %v486, %v516
        %525 = vrot.lane.b32.xlu0 %v521, 127
        %v526 = vpop.permute.xlu0 %525
        %527 = vrot.lane.b32.xlu0 %v522, 127
        %v528 = vpop.permute.xlu0 %527
        %v529 = vrot.slane %v526, 4
        %v530 = vrot.slane %v528, 4
        %vm531 = vcmask 1043456
        %v532 = vsel %vm531, %v529, %v530
        %vm533 = vcmask 1039360
        %v534 = vsel %vm533, %v526, %v532
        %536 = vst [vmem:[#allocation3 + $0x8] sm:$0xff] %v534
        %v537 = vld [vmem:[#allocation2] sm:$0xff]
        %v538 = vld [vmem:[#allocation2 + $0x8] sm:$0xf]
        %v539 = vld [vmem:[%s1] sm:$0x22]
        %v541 = vunpack.c.l.b16 %v539
        %v542 = vunpack.c.h.b16 %v539
        %v543 = vpack.c.b16 %v541, %v541
        %v544 = vpack.c.b16 %v542, %v542
        %v546 = vpack.i.b16 %v543, %v543
        %v548 = vlaneseq
        %v549 = vshrl.u32 %v548, 7
        %v550 = vsub.s32 1, %v549
        %v551 = vrot.slane %v546, %v550
        %v553 = vpack.i.b16 %v544, %v544
        %v555 = vlaneseq
        %v556 = vshrl.u32 %v555, 7
        %v557 = vsub.s32 1, %v556
        %v558 = vrot.slane %v553, %v557
        %v561 = vunpack.c.l.b16 %v551
        %v562 = vunpack.c.l.b16 %v558
        %v563 = vpack.c.b16 %v562, %v561
        %564 = vrot.lane.b32.xlu0 %v563, 2
        %v565 = vpop.permute.xlu0 %564
        %v566 = vrot.slane %v565, 4
        %vm567 = vcmask 15360
        %v568 = vsel %vm567, %v566, %v565
        %v571 = vmul.bf16 %v537, %v568
        %v572 = vmul.bf16 %v538, %v566
        %575 = vrot.lane.b32.xlu0 %v571, 126
        %v576 = vpop.permute.xlu0 %575
        %577 = vrot.lane.b32.xlu0 %v572, 126
        %v578 = vpop.permute.xlu0 %577
        %v579 = vrot.slane %v576, 4
        %v580 = vrot.slane %v578, 4
        %v581 = vsel %vm531, %v579, %v580
        %vm582 = vcmask 1031168
        %v583 = vsel %vm582, %v576, %v581
        %585 = vst [vmem:[#allocation3 + $0x10] sm:$0xff] %v583
        %v586 = vld [vmem:[#allocation2] sm:$0xff]
        %v587 = vld [vmem:[#allocation2 + $0x8] sm:$0xf]
        %v588 = vld [vmem:[%s1] sm:$0x22]
        %v590 = vunpack.c.l.b16 %v588
        %v591 = vunpack.c.h.b16 %v588
        %v592 = vpack.c.b16 %v590, %v590
        %v593 = vpack.c.b16 %v591, %v591
        %v595 = vshrl.u32 %v592, 16
        %v596 = vpack.i.b16 %v595, %v595
        %v598 = vlaneseq
        %v599 = vshrl.u32 %v598, 7
        %v600 = vsub.s32 1, %v599
        %v601 = vrot.slane %v596, %v600
        %v603 = vshrl.u32 %v593, 16
        %v604 = vpack.i.b16 %v603, %v603
        %v606 = vlaneseq
        %v607 = vshrl.u32 %v606, 7
        %v608 = vsub.s32 1, %v607
        %v609 = vrot.slane %v604, %v608
        %v612 = vunpack.c.l.b16 %v601
        %v613 = vunpack.c.l.b16 %v609
        %v614 = vpack.c.b16 %v613, %v612
        %615 = vrot.lane.b32.xlu0 %v614, 16
        %v616 = vpop.permute.xlu0 %615
        %v617 = vrot.slane %v616, 4
        %vm618 = vcmask 130048
        %v619 = vsel %vm618, %v617, %v616
        %v622 = vmul.bf16 %v586, %v619
        %v623 = vmul.bf16 %v587, %v617
        %626 = vrot.lane.b32.xlu0 %v622, 112
        %v627 = vpop.permute.xlu0 %626
        %628 = vrot.lane.b32.xlu0 %v623, 112
        %v629 = vpop.permute.xlu0 %628
        %v630 = vrot.slane %v627, 4
        %v631 = vrot.slane %v629, 4
        %v632 = vsel %vm531, %v630, %v631
        %vm633 = vcmask 916480
        %v634 = vsel %vm633, %v627, %v632
        %636 = vst [vmem:[#allocation3 + $0x18] sm:$0xff] %v634
        %638 = vst [vmem:[#allocation3 + $0x20] sm:$0xff] %v443
        %v639 = vld [vmem:[#allocation2] sm:$0xff]
        %v640 = vld [vmem:[#allocation2 + $0x8] sm:$0xf]
        %v641 = vld [vmem:[%s1] sm:$0x44]
        %v643 = vunpack.c.l.b16 %v641
        %v644 = vunpack.c.h.b16 %v641
        %v645 = vpack.c.b16 %v643, %v643
        %v646 = vpack.c.b16 %v644, %v644
        %v648 = vshrl.u32 %v645, 16
        %v649 = vpack.i.b16 %v648, %v648
        %v651 = vlaneseq
        %v652 = vshrl.u32 %v651, 7
        %v653 = vsub.s32 2, %v652
        %v654 = vrot.slane %v649, %v653
        %v656 = vshrl.u32 %v646, 16
        %v657 = vpack.i.b16 %v656, %v656
        %v659 = vlaneseq
        %v660 = vshrl.u32 %v659, 7
        %v661 = vsub.s32 2, %v660
        %v662 = vrot.slane %v657, %v661
        %v665 = vunpack.c.l.b16 %v654
        %v666 = vunpack.c.l.b16 %v662
        %v667 = vpack.c.b16 %v666, %v665
        %668 = vrot.lane.b32.xlu0 %v667, 18
        %v669 = vpop.permute.xlu0 %668
        %v670 = vrot.slane %v669, 4
        %vm671 = vcmask 146432
        %v672 = vsel %vm671, %v670, %v669
        %v675 = vmul.bf16 %v639, %v672
        %v676 = vmul.bf16 %v640, %v670
        %679 = vrot.lane.b32.xlu0 %v675, 110
        %v680 = vpop.permute.xlu0 %679
        %681 = vrot.lane.b32.xlu0 %v676, 110
        %v682 = vpop.permute.xlu0 %681
        %v683 = vrot.slane %v680, 4
        %v684 = vrot.slane %v682, 4
        %v685 = vsel %vm531, %v683, %v684
        %vm686 = vcmask 900096
        %v687 = vsel %vm686, %v680, %v685
        %689 = vst [vmem:[#allocation3 + $0x28] sm:$0xff] %v687
        %v690 = vld [vmem:[#allocation2] sm:$0xff]
        %v691 = vld [vmem:[#allocation2 + $0x8] sm:$0xf]
        %v692 = vld [vmem:[%s1] sm:$0x88]
        %v694 = vunpack.c.l.b16 %v692
        %v695 = vunpack.c.h.b16 %v692
        %v696 = vpack.c.b16 %v694, %v694
        %v697 = vpack.c.b16 %v695, %v695
        %v699 = vpack.i.b16 %v696, %v696
        %v701 = vlaneseq
        %v702 = vshrl.u32 %v701, 7
        %v703 = vsub.s32 3, %v702
        %v704 = vrot.slane %v699, %v703
        %v706 = vpack.i.b16 %v697, %v697
        %v708 = vlaneseq
        %v709 = vshrl.u32 %v708, 7
        %v710 = vsub.s32 3, %v709
        %v711 = vrot.slane %v706, %v710
        %v714 = vunpack.c.l.b16 %v704
        %v715 = vunpack.c.l.b16 %v711
        %v716 = vpack.c.b16 %v715, %v714
        %717 = vrot.lane.b32.xlu0 %v716, 32
        %v718 = vpop.permute.xlu0 %717
        %v719 = vrot.slane %v718, 4
        %vm720 = vcmask 261120
        %v721 = vsel %vm720, %v719, %v718
        %v724 = vmul.bf16 %v690, %v721
        %v725 = vmul.bf16 %v691, %v719
        %728 = vrot.lane.b32.xlu0 %v724, 96
        %v729 = vpop.permute.xlu0 %728
        %730 = vrot.lane.b32.xlu0 %v725, 96
        %v731 = vpop.permute.xlu0 %730
        %v732 = vrot.slane %v729, 4
        %v733 = vrot.slane %v731, 4
        %v734 = vsel %vm531, %v732, %v733
        %vm735 = vcmask 785408
        %v736 = vsel %vm735, %v729, %v734
        %738 = vst [vmem:[#allocation3 + $0x30] sm:$0xff] %v736
        %v739 = vld [vmem:[#allocation2] sm:$0xff]
        %v740 = vld [vmem:[#allocation2 + $0x8] sm:$0xf]
        %v741 = vld [vmem:[%s1] sm:$0x88]
        %v743 = vunpack.c.l.b16 %v741
        %v744 = vunpack.c.h.b16 %v741
        %v745 = vpack.c.b16 %v743, %v743
        %v746 = vpack.c.b16 %v744, %v744
        %v748 = vshrl.u32 %v745, 16
        %v749 = vpack.i.b16 %v748, %v748
        %v751 = vlaneseq
        %v752 = vshrl.u32 %v751, 7
        %v753 = vsub.s32 3, %v752
        %v754 = vrot.slane %v749, %v753
        %v756 = vshrl.u32 %v746, 16
        %v757 = vpack.i.b16 %v756, %v756
        %v759 = vlaneseq
        %v760 = vshrl.u32 %v759, 7
        %v761 = vsub.s32 3, %v760
        %v762 = vrot.slane %v757, %v761
        %v765 = vunpack.c.l.b16 %v754
        %v766 = vunpack.c.l.b16 %v762
        %v767 = vpack.c.b16 %v766, %v765
        %768 = vrot.lane.b32.xlu0 %v767, 33
        %v769 = vpop.permute.xlu0 %768
        %v770 = vrot.slane %v769, 4
        %vm771 = vcmask 269312
        %v772 = vsel %vm771, %v770, %v769
        %v775 = vmul.bf16 %v739, %v772
        %v776 = vmul.bf16 %v740, %v770
        %779 = vrot.lane.b32.xlu0 %v775, 95
        %v780 = vpop.permute.xlu0 %779
        %781 = vrot.lane.b32.xlu0 %v776, 95
        %v782 = vpop.permute.xlu0 %781
        %v783 = vrot.slane %v780, 4
        %v784 = vrot.slane %v782, 4
        %v785 = vsel %vm531, %v783, %v784
        %vm786 = vcmask 777216
        %v787 = vsel %vm786, %v780, %v785
        %789 = vst [vmem:[#allocation3 + $0x38] sm:$0xff] %v787
        %v790 = vld [vmem:[#allocation2] sm:$0xff]
        %v791 = vld [vmem:[#allocation2 + $0x8] sm:$0xf]
        %v792 = vld [vmem:[%s1 + $0x8] sm:$0x11]
        %v794 = vunpack.c.l.b16 %v792
        %v795 = vunpack.c.h.b16 %v792
        %v796 = vpack.c.b16 %v794, %v794
        %v797 = vpack.c.b16 %v795, %v795
        %v799 = vpack.i.b16 %v796, %v796
        %v801 = vlaneseq
        %v802 = vshrl.u32 %v801, 7
        %v803 = vsub.s32 0, %v802
        %v804 = vrot.slane %v799, %v803
        %v806 = vpack.i.b16 %v797, %v797
        %v808 = vlaneseq
        %v809 = vshrl.u32 %v808, 7
        %v810 = vsub.s32 0, %v809
        %v811 = vrot.slane %v806, %v810
        %v814 = vunpack.c.l.b16 %v804
        %v815 = vunpack.c.l.b16 %v811
        %v816 = vpack.c.b16 %v815, %v814
        %817 = vrot.lane.b32.xlu0 %v816, 34
        %v818 = vpop.permute.xlu0 %817
        %v819 = vrot.slane %v818, 4
        %vm820 = vcmask 277504
        %v821 = vsel %vm820, %v819, %v818
        %v824 = vmul.bf16 %v790, %v821
        %v825 = vmul.bf16 %v791, %v819
        %828 = vrot.lane.b32.xlu0 %v824, 94
        %v829 = vpop.permute.xlu0 %828
        %830 = vrot.lane.b32.xlu0 %v825, 94
        %v831 = vpop.permute.xlu0 %830
        %v832 = vrot.slane %v829, 4
        %v833 = vrot.slane %v831, 4
        %v834 = vsel %vm531, %v832, %v833
        %vm835 = vcmask 769024
        %v836 = vsel %vm835, %v829, %v834
        %838 = vst [vmem:[#allocation3 + $0x40] sm:$0xff] %v836
        %v839 = vld [vmem:[%s6] sm:$0xf]
        %v840 = vld [vmem:[#allocation3] sm:$0xff]
        %v841 = vld [vmem:[#allocation3 + $0x8] sm:$0xff]
        %v842 = vld [vmem:[#allocation3 + $0x10] sm:$0xff]
        %v843 = vld [vmem:[#allocation3 + $0x18] sm:$0xff]
        %v844 = vld [vmem:[#allocation3 + $0x20] sm:$0xff]
        %v845 = vld [vmem:[#allocation3 + $0x28] sm:$0xff]
        %v846 = vld [vmem:[#allocation3 + $0x30] sm:$0xff]
        %v847 = vld [vmem:[#allocation3 + $0x38] sm:$0xff]
        %v848 = vld [vmem:[#allocation3 + $0x40] sm:$0xff]
        %v849 = vld [vmem:[%s7] sm:$0xff]
        %851 = vset.pattern.permute.xlu0 0
        %852 = vperm.xlu0 %851, %v849
        %v853 = vpop.permute.xlu0 %852
        %v864 = vunpack.c.l.b16 %v840
        %v865 = vunpack.c.h.b16 %v840
        %v866 = vunpack.c.l.b16 %v841
        %v867 = vunpack.c.h.b16 %v841
        %v868 = vunpack.c.l.b16 %v842
        %v869 = vunpack.c.h.b16 %v842
        %v870 = vunpack.c.l.b16 %v843
        %v871 = vunpack.c.h.b16 %v843
        %v872 = vunpack.c.l.b16 %v844
        %v873 = vunpack.c.h.b16 %v844
        %v874 = vunpack.c.l.b16 %v845
        %v875 = vunpack.c.h.b16 %v845
        %v876 = vunpack.c.l.b16 %v846
        %v877 = vunpack.c.h.b16 %v846
        %v878 = vunpack.c.l.b16 %v847
        %v879 = vunpack.c.h.b16 %v847
        %v880 = vunpack.c.l.b16 %v848
        %v881 = vunpack.c.h.b16 %v848
        %v882 = vpack.c.b16 %v866, %v864
        %v883 = vpack.c.b16 %v867, %v865
        %v884 = vpack.c.b16 %v870, %v868
        %v885 = vpack.c.b16 %v871, %v869
        %v886 = vpack.c.b16 %v874, %v872
        %v887 = vpack.c.b16 %v875, %v873
        %v888 = vpack.c.b16 %v878, %v876
        %v889 = vpack.c.b16 %v879, %v877
        %v890 = vpack.c.b16 %v880, %v880
        %v891 = vpack.c.b16 %v881, %v881
        %vm900 = vcmask 588800
        %v902 = vsel %vm900, %v839, 0
        %v905 = vsel %vm385, %v890, 0
        %v908 = vsel %vm385, %v891, 0
        %910 = vmatprep.subr.bf16.mxu0 %v883
        %911 = vmatpush1.bf16.msra.mxu0 %v882
        %912 = vmatprep.subr.bf16.mxu0 %v885
        %913 = vmatpush1.bf16.msra.mxu0 %v884
        %914 = vmatprep.subr.bf16.mxu0 %v887
        %915 = vmatpush1.bf16.msra.mxu0 %v886
        %916 = vmatprep.subr.bf16.mxu0 %v889
        %917 = vmatpush1.bf16.msra.mxu0 %v888
        %918 = vmatprep.subr.bf16.mxu0 %v908
        %919 = vmatpush1.bf16.msra.mxu0 %v905
        %920 = vmatprep.subr.bf16.mxu0 0
        %921 = vmatpush1.bf16.msra.mxu0 0
        %922 = vmatprep.subr.bf16.mxu0 0
        %923 = vmatpush1.bf16.msra.mxu0 0
        %924 = vmatprep.subr.bf16.mxu0 0
        %925 = vmatpush1.bf16.msra.mxu0 0
        %926 = vmatprep.subr.bf16.mxu0 0
        %927 = vmatpush1.bf16.msra.mxu0 0
        %928 = vmatprep.subr.bf16.mxu0 0
        %929 = vmatpush1.bf16.msra.mxu0 0
        %930 = vmatprep.subr.bf16.mxu0 0
        %931 = vmatpush1.bf16.msra.mxu0 0
        %932 = vmatprep.subr.bf16.mxu0 0
        %933 = vmatpush1.bf16.msra.mxu0 0
        %934 = vmatprep.subr.bf16.mxu0 0
        %935 = vmatpush1.bf16.msra.mxu0 0
        %936 = vmatprep.subr.bf16.mxu0 0
        %937 = vmatpush1.bf16.msra.mxu0 0
        %938 = vmatprep.subr.bf16.mxu0 0
        %939 = vmatpush1.bf16.msra.mxu0 0
        %940 = vmatprep.subr.bf16.mxu0 0
        %941 = vmatpush1.bf16.msra.mxu0 0
        %942 = vmatprep.mubr.bf16.mxu0 0
        %943 = vmatmul.mubr.bf16.gmra.mrb[0].mxu0 %v902
        %v944 = vpop.f32.mrb[0].mxu0
        %v945 = vadd.f32 %v853, %v944
        %v946 = vpop.f32.mrb[0].mxu0
        %v947 = vadd.f32 %v853, %v946
        %v948 = vpop.f32.mrb[0].mxu0
        %v949 = vpop.f32.mrb[0].mxu0
        %950 = vdwg.mxu0
        %v951 = vmax.f32 %v945, 0.0
        %v952 = vmax.f32 %v947, 0.0
        %v953 = vpack.c.bf16 %v951, %v433
        %v954 = vpack.c.bf16 %v952, %v434
        %v957 = vunpack.c.l.b16 %v953
        %v958 = vunpack.c.l.b16 %v954
        %v959 = vunpack.c.h.b16 %v953
        %v960 = vunpack.c.h.b16 %v954
        %v961 = vpack.c.b16 %v958, %v957
        %v962 = vpack.c.b16 %v960, %v959
        %965 = vst [vmem:[%s298] sm:$0xff] %v961
        %966 = vst [vmem:[%s298 + $0x8] sm:$0xff] %v962
        %s967 = sand.u32 %s203, 1
        %s968 = scalar_lea.sflag [#allocation5], %s967
        %s969 = sand.u32 %s203, 1
        %s970 = smul.addr %s969, 16
        %s971 = scalar_lea.vmem [#allocation4], %s970
        // Predicated region
        $region53: #{tpu_custom_call.1} parent=51 // pred_check
          %p972 = pneg %p213
        $region54: #{tpu_custom_call.1} parent=51 // pred_check_branch
          %974 = sbr.rel (%p972) target = $region56
        $region55: #{tpu_custom_call.1} parent=51 // pred_region
          %s976 = ssub.s32 256, 256
          %977 = vsyncadd %s968, %s976
          %s978 = smul.addr %s22, 4
          %s979 = smul.addr %s978, 64
          %s980 = scalar_lea.hbm %s8, %s979
          %s981 = sshll.u32 %s971, 4
          %s982 = int_to_ptr.vmem [resolvable:$true] %s981
          %987 = dma.vmem_to_hbm [thread:$0]  %s982, 256, %s980, %s968, 128, 128, 8
        $region56: #{tpu_custom_call.1} parent=51 // pred_fallthru
          _
      $region52: #{tpu_custom_call.1} parent=5 // pred_fallthru
        _
      %p988 = scmp.le.s32.totalorder 2, %s17
      // Predicated region
      $region57: #{tpu_custom_call.1} parent=5 // pred_check
        %p989 = pneg %p988
      $region58: #{tpu_custom_call.1} parent=5 // pred_check_branch
        %991 = sbr.rel (%p989) target = $region60
      $region59: #{tpu_custom_call.1} parent=5 // pred_region
        %s992 = ssub.s32 %s17, 2
        // Predicated region
        $region61: #{tpu_custom_call.1} parent=59 // pred_check
          %p993 = pneg %p219
        $region62: #{tpu_custom_call.1} parent=59 // pred_check_branch
          %995 = sbr.rel (%p993) target = $region64
        $region63: #{tpu_custom_call.1} parent=59 // pred_region
          %s996 = sand.u32 %s204, 1
          %s997 = scalar_lea.sflag [#allocation5], %s996
          %s998 = sand.u32 %s204, 1
          %s999 = smul.addr %s998, 16
          %s1000 = scalar_lea.vmem [#allocation4], %s999
          %1001 = dma.done %s997, 256
        $region64: #{tpu_custom_call.1} parent=59 // pred_fallthru
          _
      $region60: #{tpu_custom_call.1} parent=5 // pred_fallthru
        _
    $region6: #{tpu_custom_call.1} parent=1 // loop_footer
      %s21 = sadd.s32 1, %s17
    $region7: #{tpu_custom_call.1} parent=1 // loop_footer_branch
      %16 = sbr.rel target = $region3
    $region8: #{tpu_custom_call.1} parent=1 // loop_exit
      _
    %1002 = vsyncpa [#allocation5], 1
    %s1003 = scalar_lea.sflag [#allocation5], 1
    %1004 = vsyncpa %s1003, 1

</llo_original>
